<compile_context>
chip_gen: v5e
topology: v5e:2x2
jax: 0.10.0
libtpu: 0.0.40
codegen_flags: <defaults>
</compile_context>

<pallas_src>
import jax
import jax.numpy as jnp
from jax.experimental import pallas as pl
from jax.experimental.pallas import tpu as pltpu

C_IN = 4           # input_char_dim (char embedding size)
WORD_MAXLEN = 16   # W
C1 = 20            # conv1 out channels
C2 = 30            # conv2 out channels / mlp size
LANE = 128         # TPU lane width
TN_MAX = 512       # max words (rows) per grid step


def _round_up(x, m):
    return (x + m - 1) // m * m


def cnn_kernel(x_ref, wf_ref, bf_ref, wm_ref, bm_ref, o_ref):
    """One grid step: TN words, fully vectorized.

    x_ref : (TN, W*C_IN)      flattened words (compute dtype)
    wf_ref: (W*C_IN, Q*LANE)  fused conv1*conv2 weight, per-position 128-pad
    bf_ref: (1, LANE)         fused conv bias (identical for every position)
    wm_ref: (LANE, LANE)      Linear(30,30) weight (in, out), zero padded, f32
    bm_ref: (1, LANE)         Linear bias, zero padded, f32
    o_ref : (TN, LANE)        lane-dense output block (cols >= C2 are zero)
    """
    q_slots = wf_ref.shape[1] // LANE   # = word_maxlen - 3

    # Fused conv1+conv2 for all words and all conv positions: one MXU matmul.
    h = jnp.dot(x_ref[...], wf_ref[...],
                preferred_element_type=jnp.float32)        # (TN, Q*LANE), f32

    # MaxPool2d([1, W-3]) over the conv-position axis: static, lane-aligned
    # slices (pure vreg selection) + Q-1 elementwise maxima on the VPU.
    m = h[:, :LANE]
    for q in range(1, q_slots):
        m = jnp.maximum(m, h[:, q * LANE:(q + 1) * LANE])

    # Fused bias is position-independent -> add once after the max; tanh in f32.
    t = jnp.tanh(m + bf_ref[...])

    # Final Linear(30, 30), zero padded to 128x128; single bulk lane-dense store.
    out = jnp.dot(t, wm_ref[...], preferred_element_type=jnp.float32) + bm_ref[...]
    o_ref[...] = out.astype(o_ref.dtype)


def _fuse_params(params, word_maxlen, c_in):
    """Precompute fused conv1∘conv2 weight/bias and 128-padded Linear params."""
    w1, b1, w2, b2, wm, bm = params
    c2 = w2.shape[2]
    q_slots = word_maxlen - 3                 # conv2 output width before pooling

    # w12[dw, dv, c, o2] = sum_o1 w1[dw, c, o1] * w2[dv, o1, o2]
    w12 = jnp.einsum("dco,eop->decp", w1.astype(jnp.float32),
                     w2.astype(jnp.float32))
    wf4 = jnp.zeros((word_maxlen, c_in, q_slots, LANE), jnp.float32)
    for q in range(q_slots):
        for dv in range(2):
            for dw in range(3):
                wf4 = wf4.at[q + dv + dw, :, q, :c2].add(w12[dw, dv])
    wf = wf4.reshape(word_maxlen * c_in, q_slots * LANE)

    # Fused bias: b2 + w2-mixed b1 (same for every conv position).
    bf_core = b2.reshape(-1).astype(jnp.float32) + jnp.einsum(
        "dop,o->p", w2.astype(jnp.float32), b1.reshape(-1).astype(jnp.float32))
    bf = jnp.zeros((1, LANE), jnp.float32).at[0, :c2].set(bf_core)

    wm_pad = jnp.zeros((LANE, LANE), jnp.float32).at[:c2, :c2].set(
        wm.astype(jnp.float32))
    bm_pad = jnp.zeros((1, LANE), jnp.float32).at[0, :c2].set(
        bm.reshape(-1).astype(jnp.float32))
    return wf, bf, wm_pad, bm_pad


def cnn_forward(x_nchw, params, *, compute_dtype=jnp.float32, tn_max=TN_MAX):
    """x_nchw: (B, input_char_dim, num_words, word_maxlen) -> (B, num_words, 30)."""
    B, C, H, W = x_nchw.shape
    assert W >= 4, "word_maxlen must be >= 4"
    K = W * C
    q_slots = W - 3
    c2 = params[4].shape[1]

    wf, bf, wm_pad, bm_pad = _fuse_params(params, W, C)

    # Words as rows; chars*channels flattened on the lane axis.
    x = jnp.transpose(x_nchw, (0, 2, 3, 1)).reshape(B * H, K)
    n = B * H
    tn = min(tn_max, _round_up(n, 8))
    n_pad = _round_up(n, tn)
    if n_pad != n:
        x = jnp.pad(x, ((0, n_pad - n), (0, 0)))

    # Only x and the fused weight feed the MXU; accumulation stays f32 and all
    # VPU/EUP work (max, bias add, tanh) is f32 on every generation.
    x = x.astype(compute_dtype)
    wf = wf.astype(compute_dtype)

    out = pl.pallas_call(
        cnn_kernel,
        out_shape=jax.ShapeDtypeStruct((n_pad, LANE), jnp.float32),
        grid=(n_pad // tn,),
        in_specs=[
            pl.BlockSpec((tn, K), lambda i: (i, 0)),
            pl.BlockSpec((K, q_slots * LANE), lambda i: (0, 0)),
            pl.BlockSpec((1, LANE), lambda i: (0, 0)),
            pl.BlockSpec((LANE, LANE), lambda i: (0, 0)),
            pl.BlockSpec((1, LANE), lambda i: (0, 0)),
        ],
        out_specs=pl.BlockSpec((tn, LANE), lambda i: (i, 0)),
        compiler_params=pltpu.CompilerParams(
            dimension_semantics=("parallel",)),
    )(x, wf, bf, wm_pad, bm_pad)

    return out[:n, :c2].reshape(B, H, c2)


def cnn_reference(x_nchw, params):
    """Pure-JAX reference mirroring the PyTorch forward (eval mode)."""
    w1, b1, w2, b2, wm, bm = params
    x = jnp.transpose(x_nchw, (0, 2, 3, 1)).astype(jnp.float32)  # (B, H, W, C)
    W = x.shape[2]
    w1_out = W - 2
    h1 = b1.reshape(1, 1, 1, -1) + sum(
        jnp.einsum("bhwc,co->bhwo", x[:, :, dw:dw + w1_out, :], w1[dw])
        for dw in range(3))
    w2_out = w1_out - 1
    h2 = b2.reshape(1, 1, 1, -1) + sum(
        jnp.einsum("bhwc,co->bhwo", h1[:, :, dw:dw + w2_out, :], w2[dw])
        for dw in range(2))
    pooled = jnp.max(h2, axis=2)              # (B, H, C2)
    t = jnp.tanh(pooled)
    return jnp.einsum("bhc,co->bho", t, wm) + bm.reshape(1, 1, -1)


if __name__ == "__main__":
    key = jax.random.PRNGKey(0)
    kx, k1, k2, k3, k4, k5, k6 = jax.random.split(key, 7)

    B, H = 2, 8  # batch, words per sentence
    # PyTorch NCHW input: (B, input_char_dim, num_words, word_maxlen)
    x = jax.random.normal(kx, (B, C_IN, H, WORD_MAXLEN), dtype=jnp.float32)

    # Deterministic synthetic parameters (shapes match the nn.Module).
    # Conv2d weights stored as (kw, c_in, c_out); Linear weight stored (in, out).
    w1 = 0.1 * jax.random.normal(k1, (3, C_IN, C1), dtype=jnp.float32)
    b1 = 0.1 * jax.random.normal(k2, (1, C1), dtype=jnp.float32)
    w2 = 0.1 * jax.random.normal(k3, (2, C1, C2), dtype=jnp.float32)
    b2 = 0.1 * jax.random.normal(k4, (1, C2), dtype=jnp.float32)
    wm = 0.1 * jax.random.normal(k5, (C2, C2), dtype=jnp.float32)
    bm = 0.1 * jax.random.normal(k6, (1, C2), dtype=jnp.float32)
    params = (w1, b1, w2, b2, wm, bm)

    ref = cnn_reference(x, params)

    # f32 path: tight tolerance (validates the conv1∘conv2 fusion exactly).
    out = jax.block_until_ready(cnn_forward(x, params))
    assert out.shape == (B, H, C2), out.shape
    err = float(jnp.max(jnp.abs(out - ref)))
    assert jnp.allclose(out, ref, atol=1e-5, rtol=1e-5), f"f32 max err {err}"

    # bf16 HBM/MXU path (f32 accumulation + f32 tanh): loose tolerance.
    out_bf16 = jax.block_until_ready(
        cnn_forward(x, params, compute_dtype=jnp.bfloat16))
    err_bf16 = float(jnp.max(jnp.abs(out_bf16 - ref)))
    assert jnp.allclose(out_bf16, ref, atol=5e-2, rtol=5e-2), \
        f"bf16 max err {err_bf16}"

    print("KERNEL_OK")
</pallas_src>

<mosaic_0001>
module attributes {stable_mosaic.version = 11 : i64} {
  func.func @cnn_kernel(%arg0: i32, %arg1: memref<16x64xf32, #tpu.memory_space<vmem>>, %arg2: memref<64x1664xf32, #tpu.memory_space<vmem>>, %arg3: memref<1x128xf32, #tpu.memory_space<vmem>>, %arg4: memref<128x128xf32, #tpu.memory_space<vmem>>, %arg5: memref<1x128xf32, #tpu.memory_space<vmem>>, %arg6: memref<16x128xf32, #tpu.memory_space<vmem>>) attributes {dimension_semantics = [#tpu.dimension_semantics<parallel>], iteration_bounds = array<i64: 1>, scalar_prefetch = 0 : i64, scratch_operands = 0 : i64, tpu.core_type = #tpu.core_type<tc>, window_params = [{transform_indices = @transform_0, window_bounds = array<i64: 16, 64>}, {pipeline_mode = #tpu.pipeline_mode<synchronous>, transform_indices = @transform_1, window_bounds = array<i64: 64, 1664>}, {pipeline_mode = #tpu.pipeline_mode<synchronous>, transform_indices = @transform_2, window_bounds = array<i64: 1, 128>}, {pipeline_mode = #tpu.pipeline_mode<synchronous>, transform_indices = @transform_3, window_bounds = array<i64: 128, 128>}, {pipeline_mode = #tpu.pipeline_mode<synchronous>, transform_indices = @transform_4, window_bounds = array<i64: 1, 128>}, {transform_indices = @transform_5, window_bounds = array<i64: 16, 128>}]} {
    %c0 = arith.constant 0 : index
    %c0_0 = arith.constant 0 : index
    %0 = vector.load %arg1[%c0, %c0_0] : memref<16x64xf32, #tpu.memory_space<vmem>>, vector<16x64xf32>
    %c0_1 = arith.constant 0 : index
    %c0_2 = arith.constant 0 : index
    %1 = vector.load %arg2[%c0_1, %c0_2] : memref<64x1664xf32, #tpu.memory_space<vmem>>, vector<64x1664xf32>
    %cst = arith.constant dense<0.000000e+00> : vector<16x1664xf32>
    %2 = tpu.matmul %0, %1, %cst {dimension_numbers = #tpu.dot_dimension_numbers<[1], [0], [0], [1], [0, 0, 1, 1], [], []>} : vector<16x64xf32>, vector<64x1664xf32>, vector<16x1664xf32> -> vector<16x1664xf32>
    %3 = vector.extract_strided_slice %2 {offsets = [0, 0], sizes = [16, 128], strides = [1, 1]} : vector<16x1664xf32> to vector<16x128xf32>
    %4 = vector.extract_strided_slice %2 {offsets = [0, 128], sizes = [16, 128], strides = [1, 1]} : vector<16x1664xf32> to vector<16x128xf32>
    %5 = arith.maximumf %3, %4 : vector<16x128xf32>
    %6 = vector.extract_strided_slice %2 {offsets = [0, 256], sizes = [16, 128], strides = [1, 1]} : vector<16x1664xf32> to vector<16x128xf32>
    %7 = arith.maximumf %5, %6 : vector<16x128xf32>
    %8 = vector.extract_strided_slice %2 {offsets = [0, 384], sizes = [16, 128], strides = [1, 1]} : vector<16x1664xf32> to vector<16x128xf32>
    %9 = arith.maximumf %7, %8 : vector<16x128xf32>
    %10 = vector.extract_strided_slice %2 {offsets = [0, 512], sizes = [16, 128], strides = [1, 1]} : vector<16x1664xf32> to vector<16x128xf32>
    %11 = arith.maximumf %9, %10 : vector<16x128xf32>
    %12 = vector.extract_strided_slice %2 {offsets = [0, 640], sizes = [16, 128], strides = [1, 1]} : vector<16x1664xf32> to vector<16x128xf32>
    %13 = arith.maximumf %11, %12 : vector<16x128xf32>
    %14 = vector.extract_strided_slice %2 {offsets = [0, 768], sizes = [16, 128], strides = [1, 1]} : vector<16x1664xf32> to vector<16x128xf32>
    %15 = arith.maximumf %13, %14 : vector<16x128xf32>
    %16 = vector.extract_strided_slice %2 {offsets = [0, 896], sizes = [16, 128], strides = [1, 1]} : vector<16x1664xf32> to vector<16x128xf32>
    %17 = arith.maximumf %15, %16 : vector<16x128xf32>
    %18 = vector.extract_strided_slice %2 {offsets = [0, 1024], sizes = [16, 128], strides = [1, 1]} : vector<16x1664xf32> to vector<16x128xf32>
    %19 = arith.maximumf %17, %18 : vector<16x128xf32>
    %20 = vector.extract_strided_slice %2 {offsets = [0, 1152], sizes = [16, 128], strides = [1, 1]} : vector<16x1664xf32> to vector<16x128xf32>
    %21 = arith.maximumf %19, %20 : vector<16x128xf32>
    %22 = vector.extract_strided_slice %2 {offsets = [0, 1280], sizes = [16, 128], strides = [1, 1]} : vector<16x1664xf32> to vector<16x128xf32>
    %23 = arith.maximumf %21, %22 : vector<16x128xf32>
    %24 = vector.extract_strided_slice %2 {offsets = [0, 1408], sizes = [16, 128], strides = [1, 1]} : vector<16x1664xf32> to vector<16x128xf32>
    %25 = arith.maximumf %23, %24 : vector<16x128xf32>
    %26 = vector.extract_strided_slice %2 {offsets = [0, 1536], sizes = [16, 128], strides = [1, 1]} : vector<16x1664xf32> to vector<16x128xf32>
    %27 = arith.maximumf %25, %26 : vector<16x128xf32>
    %c0_3 = arith.constant 0 : index
    %c0_4 = arith.constant 0 : index
    %28 = vector.load %arg3[%c0_3, %c0_4] : memref<1x128xf32, #tpu.memory_space<vmem>>, vector<1x128xf32>
    %29 = vector.broadcast %28 : vector<1x128xf32> to vector<16x128xf32>
    %30 = arith.addf %27, %29 : vector<16x128xf32>
    %31 = math.tanh %30 : vector<16x128xf32>
    %c0_5 = arith.constant 0 : index
    %c0_6 = arith.constant 0 : index
    %32 = vector.load %arg4[%c0_5, %c0_6] : memref<128x128xf32, #tpu.memory_space<vmem>>, vector<128x128xf32>
    %cst_7 = arith.constant dense<0.000000e+00> : vector<16x128xf32>
    %33 = tpu.matmul %31, %32, %cst_7 {dimension_numbers = #tpu.dot_dimension_numbers<[1], [0], [0], [1], [0, 0, 1, 1], [], []>} : vector<16x128xf32>, vector<128x128xf32>, vector<16x128xf32> -> vector<16x128xf32>
    %c0_8 = arith.constant 0 : index
    %c0_9 = arith.constant 0 : index
    %34 = vector.load %arg5[%c0_8, %c0_9] : memref<1x128xf32, #tpu.memory_space<vmem>>, vector<1x128xf32>
    %35 = vector.broadcast %34 : vector<1x128xf32> to vector<16x128xf32>
    %36 = arith.addf %33, %35 : vector<16x128xf32>
    %c0_10 = arith.constant 0 : index
    %c0_11 = arith.constant 0 : index
    %37 = vector.load %arg6[%c0_10, %c0_11] : memref<16x128xf32, #tpu.memory_space<vmem>>, vector<16x128xf32>
    tpu.vector_store %arg6[%c0_10, %c0_11], %36 {strides = array<i32>} : memref<16x128xf32, #tpu.memory_space<vmem>>, vector<16x128xf32>,
    return
  }
  func.func @transform_0(%arg0: i32) -> (i32, i32) {
    %c0_i32 = arith.constant 0 : i32
    %c0_i32_0 = arith.constant 0 : i32
    return %arg0, %c0_i32 : i32, i32
  }
  func.func @transform_1(%arg0: i32) -> (i32, i32) {
    %c0_i32 = arith.constant 0 : i32
    %c0_i32_0 = arith.constant 0 : i32
    %c0_i32_1 = arith.constant 0 : i32
    return %c0_i32, %c0_i32_0 : i32, i32
  }
  func.func @transform_2(%arg0: i32) -> (i32, i32) {
    %c0_i32 = arith.constant 0 : i32
    %c0_i32_0 = arith.constant 0 : i32
    %c0_i32_1 = arith.constant 0 : i32
    return %c0_i32, %c0_i32_0 : i32, i32
  }
  func.func @transform_3(%arg0: i32) -> (i32, i32) {
    %c0_i32 = arith.constant 0 : i32
    %c0_i32_0 = arith.constant 0 : i32
    %c0_i32_1 = arith.constant 0 : i32
    return %c0_i32, %c0_i32_0 : i32, i32
  }
  func.func @transform_4(%arg0: i32) -> (i32, i32) {
    %c0_i32 = arith.constant 0 : i32
    %c0_i32_0 = arith.constant 0 : i32
    %c0_i32_1 = arith.constant 0 : i32
    return %c0_i32, %c0_i32_0 : i32, i32
  }
  func.func @transform_5(%arg0: i32) -> (i32, i32) {
    %c0_i32 = arith.constant 0 : i32
    %c0_i32_0 = arith.constant 0 : i32
    return %arg0, %c0_i32 : i32, i32
  }
}

</mosaic_0001>

<llo_original>
// kernel: tpu_custom_call.1
$region0: #{tpu_custom_call.1}
  #allocation0 [shape = 'u32[]', space=smem, size = 0x4, offset = 0x4, fixed_abs, tag = 'smem constant byte address 0x4 - core index']
  #allocation1 [shape = 'u32[72,128]{1,0:T(1,128)}', space=vmem, size = 0x9000, scoped, tag = 'internal scratch']
  %s0 = inlined_call_operand.hbm [shape: f32[16,64], index: 0, kind: input, shape index: {}]
  %s1 = inlined_call_operand.hbm [shape: f32[64,1664], index: 1, kind: input, shape index: {}]
  %s2 = inlined_call_operand.vmem [shape: f32[1,128], index: 2, kind: input, shape index: {}]
  %s3 = inlined_call_operand.hbm [shape: f32[128,128], index: 3, kind: input, shape index: {}]
  %s4 = inlined_call_operand.vmem [shape: f32[1,128], index: 4, kind: input, shape index: {}]
  %s5 = inlined_call_operand.hbm [shape: f32[16,128], index: 5, kind: output, shape index: {}]
  %s6 = sld [smem:[#allocation0]]
  $region42: #{tpu_custom_call.1} parent=0
    _
  %s8 = ssub.s32 1, %s6
  %s9 = scalar_select 0, %s8, %s6
  $region1: #{tpu_custom_call.1} parent=0
    #allocation2 [shape = 'u8[8192]{0}', space=vmem, size = 0x2000, scoped, tag = 'input window, operand 0, single buffered']
    #allocation3 [shape = 's32[1]{0}', space=sflag, size = 0x4, scoped, tag = 'scoped memory for tpu_custom_call.1']
    #allocation4 [shape = 's32[1]{0}', space=sflag, size = 0x4, scoped, tag = 'scoped memory for tpu_custom_call.1']
    #allocation5 [shape = 'u8[425984]{0}', space=vmem, size = 0x68000, scoped, tag = 'input window, operand 1, single buffered']
    #allocation6 [shape = 's32[1]{0}', space=sflag, size = 0x4, scoped, tag = 'scoped memory for tpu_custom_call.1']
    #allocation7 [shape = 'u8[65536]{0}', space=vmem, size = 0x10000, scoped, tag = 'input window, operand 3, single buffered']
    #allocation8 [shape = 'u8[8192]{0}', space=vmem, size = 0x2000, scoped, tag = 'output window, operand 0, single buffered']
    %10 = vsyncpa [#allocation3], 0
    %11 = vsyncpa [#allocation6], 0
    %12 = vsyncpa [#allocation4], 0
    // Predicated region
    $region2: #{tpu_custom_call.1} parent=1 // pred_check
      _
    $region3: #{tpu_custom_call.1} parent=1 // pred_check_branch
      %14 = sbr.rel (0) target = $region5
    $region4: #{tpu_custom_call.1} parent=1 // pred_region
      %16 = vsyncadd [#allocation3], 0
      %s17 = sshll.u32 %s0, 4
      %s18 = int_to_ptr.hbm [resolvable:$true] %s17
      %s19 = sshll.u32 [#allocation2], 4
      %s20 = int_to_ptr.vmem [resolvable:$true] %s19
      %25 = dma.hbm_to_vmem [thread:$0]  %s18, 256, %s20, [#allocation3], 128, 128, 8
    $region5: #{tpu_custom_call.1} parent=1 // pred_fallthru
      _
    // Predicated region
    $region6: #{tpu_custom_call.1} parent=1 // pred_check
      _
    $region7: #{tpu_custom_call.1} parent=1 // pred_check_branch
      %27 = sbr.rel (0) target = $region9
    $region8: #{tpu_custom_call.1} parent=1 // pred_region
      %29 = vsyncadd [#allocation6], 0
      %s30 = sshll.u32 %s1, 4
      %s31 = int_to_ptr.hbm [resolvable:$true] %s30
      %s32 = sshll.u32 [#allocation5], 4
      %s33 = int_to_ptr.vmem [resolvable:$true] %s32
      %38 = dma.hbm_to_vmem [thread:$0]  %s31, 13312, %s33, [#allocation6], 1664, 1664, 104
    $region9: #{tpu_custom_call.1} parent=1 // pred_fallthru
      _
    // Predicated region
    $region10: #{tpu_custom_call.1} parent=1 // pred_check
      _
    $region11: #{tpu_custom_call.1} parent=1 // pred_check_branch
      %40 = sbr.rel (0) target = $region13
    $region12: #{tpu_custom_call.1} parent=1 // pred_region
      _
    $region13: #{tpu_custom_call.1} parent=1 // pred_fallthru
      _
    // Predicated region
    $region14: #{tpu_custom_call.1} parent=1 // pred_check
      _
    $region15: #{tpu_custom_call.1} parent=1 // pred_check_branch
      %42 = sbr.rel (0) target = $region17
    $region16: #{tpu_custom_call.1} parent=1 // pred_region
      %44 = vsyncadd [#allocation6], 0
      %s45 = sshll.u32 %s3, 4
      %s46 = int_to_ptr.hbm [resolvable:$true] %s45
      %s47 = sshll.u32 [#allocation7], 4
      %s48 = int_to_ptr.vmem [resolvable:$true] %s47
      %53 = dma.hbm_to_vmem [thread:$0]  %s46, 2048, %s48, [#allocation6], 128, 128, 8
    $region17: #{tpu_custom_call.1} parent=1 // pred_fallthru
      _
    // Predicated region
    $region18: #{tpu_custom_call.1} parent=1 // pred_check
      _
    $region19: #{tpu_custom_call.1} parent=1 // pred_check_branch
      %55 = sbr.rel (0) target = $region21
    $region20: #{tpu_custom_call.1} parent=1 // pred_region
      _
    $region21: #{tpu_custom_call.1} parent=1 // pred_fallthru
      _
    // Predicated region
    $region22: #{tpu_custom_call.1} parent=1 // pred_check
      _
    $region23: #{tpu_custom_call.1} parent=1 // pred_check_branch
      %57 = sbr.rel (0) target = $region25
    $region24: #{tpu_custom_call.1} parent=1 // pred_region
      %59 = dma.done [#allocation3], 256
    $region25: #{tpu_custom_call.1} parent=1 // pred_fallthru
      _
    // Predicated region
    $region26: #{tpu_custom_call.1} parent=1 // pred_check
      _
    $region27: #{tpu_custom_call.1} parent=1 // pred_check_branch
      %61 = sbr.rel (0) target = $region29
    $region28: #{tpu_custom_call.1} parent=1 // pred_region
      %63 = dma.done [#allocation6], 13312
    $region29: #{tpu_custom_call.1} parent=1 // pred_fallthru
      _
    // Predicated region
    $region30: #{tpu_custom_call.1} parent=1 // pred_check
      _
    $region31: #{tpu_custom_call.1} parent=1 // pred_check_branch
      %65 = sbr.rel (0) target = $region33
    $region32: #{tpu_custom_call.1} parent=1 // pred_region
      %67 = dma.done [#allocation6], 2048
    $region33: #{tpu_custom_call.1} parent=1 // pred_fallthru
      _
    %v68 = vld [vmem:[#allocation2] sm:$0xff]
    %v69 = vld [vmem:[#allocation2 + $0x8] sm:$0xff]
    %v70 = vld [vmem:[#allocation5] sm:$0xff]
    %v71 = vld [vmem:[#allocation5 + $0x8] sm:$0xff]
    %v72 = vld [vmem:[#allocation5 + $0x10] sm:$0xff]
    %v73 = vld [vmem:[#allocation5 + $0x18] sm:$0xff]
    %v74 = vld [vmem:[#allocation5 + $0x20] sm:$0xff]
    %v75 = vld [vmem:[#allocation5 + $0x28] sm:$0xff]
    %v76 = vld [vmem:[#allocation5 + $0x30] sm:$0xff]
    %v77 = vld [vmem:[#allocation5 + $0x38] sm:$0xff]
    %v78 = vld [vmem:[#allocation5 + $0x40] sm:$0xff]
    %v79 = vld [vmem:[#allocation5 + $0x48] sm:$0xff]
    %v80 = vld [vmem:[#allocation5 + $0x50] sm:$0xff]
    %v81 = vld [vmem:[#allocation5 + $0x58] sm:$0xff]
    %v82 = vld [vmem:[#allocation5 + $0x60] sm:$0xff]
    %v83 = vld [vmem:[#allocation5 + $0x68] sm:$0xff]
    %v84 = vld [vmem:[#allocation5 + $0x70] sm:$0xff]
    %v85 = vld [vmem:[#allocation5 + $0x78] sm:$0xff]
    %v86 = vld [vmem:[#allocation5 + $0x80] sm:$0xff]
    %v87 = vld [vmem:[#allocation5 + $0x88] sm:$0xff]
    %v88 = vld [vmem:[#allocation5 + $0x90] sm:$0xff]
    %v89 = vld [vmem:[#allocation5 + $0x98] sm:$0xff]
    %v90 = vld [vmem:[#allocation5 + $0xa0] sm:$0xff]
    %v91 = vld [vmem:[#allocation5 + $0xa8] sm:$0xff]
    %v92 = vld [vmem:[#allocation5 + $0xb0] sm:$0xff]
    %v93 = vld [vmem:[#allocation5 + $0xb8] sm:$0xff]
    %v94 = vld [vmem:[#allocation5 + $0xc0] sm:$0xff]
    %v95 = vld [vmem:[#allocation5 + $0xc8] sm:$0xff]
    %v96 = vld [vmem:[#allocation5 + $0xd0] sm:$0xff]
    %v97 = vld [vmem:[#allocation5 + $0xd8] sm:$0xff]
    %v98 = vld [vmem:[#allocation5 + $0xe0] sm:$0xff]
    %v99 = vld [vmem:[#allocation5 + $0xe8] sm:$0xff]
    %v100 = vld [vmem:[#allocation5 + $0xf0] sm:$0xff]
    %v101 = vld [vmem:[#allocation5 + $0xf8] sm:$0xff]
    %v102 = vld [vmem:[#allocation5 + $0x100] sm:$0xff]
    %v103 = vld [vmem:[#allocation5 + $0x108] sm:$0xff]
    %v104 = vld [vmem:[#allocation5 + $0x110] sm:$0xff]
    %v105 = vld [vmem:[#allocation5 + $0x118] sm:$0xff]
    %v106 = vld [vmem:[#allocation5 + $0x120] sm:$0xff]
    %v107 = vld [vmem:[#allocation5 + $0x128] sm:$0xff]
    %v108 = vld [vmem:[#allocation5 + $0x130] sm:$0xff]
    %v109 = vld [vmem:[#allocation5 + $0x138] sm:$0xff]
    %v110 = vld [vmem:[#allocation5 + $0x140] sm:$0xff]
    %v111 = vld [vmem:[#allocation5 + $0x148] sm:$0xff]
    %v112 = vld [vmem:[#allocation5 + $0x150] sm:$0xff]
    %v113 = vld [vmem:[#allocation5 + $0x158] sm:$0xff]
    %v114 = vld [vmem:[#allocation5 + $0x160] sm:$0xff]
    %v115 = vld [vmem:[#allocation5 + $0x168] sm:$0xff]
    %v116 = vld [vmem:[#allocation5 + $0x170] sm:$0xff]
    %v117 = vld [vmem:[#allocation5 + $0x178] sm:$0xff]
    %v118 = vld [vmem:[#allocation5 + $0x180] sm:$0xff]
    %v119 = vld [vmem:[#allocation5 + $0x188] sm:$0xff]
    %v120 = vld [vmem:[#allocation5 + $0x190] sm:$0xff]
    %v121 = vld [vmem:[#allocation5 + $0x198] sm:$0xff]
    %v122 = vld [vmem:[#allocation5 + $0x1a0] sm:$0xff]
    %v123 = vld [vmem:[#allocation5 + $0x1a8] sm:$0xff]
    %v124 = vld [vmem:[#allocation5 + $0x1b0] sm:$0xff]
    %v125 = vld [vmem:[#allocation5 + $0x1b8] sm:$0xff]
    %v126 = vld [vmem:[#allocation5 + $0x1c0] sm:$0xff]
    %v127 = vld [vmem:[#allocation5 + $0x1c8] sm:$0xff]
    %v128 = vld [vmem:[#allocation5 + $0x1d0] sm:$0xff]
    %v129 = vld [vmem:[#allocation5 + $0x1d8] sm:$0xff]
    %v130 = vld [vmem:[#allocation5 + $0x1e0] sm:$0xff]
    %v131 = vld [vmem:[#allocation5 + $0x1e8] sm:$0xff]
    %v132 = vld [vmem:[#allocation5 + $0x1f0] sm:$0xff]
    %v133 = vld [vmem:[#allocation5 + $0x1f8] sm:$0xff]
    %v134 = vld [vmem:[#allocation5 + $0x200] sm:$0xff]
    %v135 = vld [vmem:[#allocation5 + $0x208] sm:$0xff]
    %v136 = vld [vmem:[#allocation5 + $0x210] sm:$0xff]
    %v137 = vld [vmem:[#allocation5 + $0x218] sm:$0xff]
    %v138 = vld [vmem:[#allocation5 + $0x220] sm:$0xff]
    %v139 = vld [vmem:[#allocation5 + $0x228] sm:$0xff]
    %v140 = vld [vmem:[#allocation5 + $0x230] sm:$0xff]
    %v141 = vld [vmem:[#allocation5 + $0x238] sm:$0xff]
    %v142 = vld [vmem:[#allocation5 + $0x240] sm:$0xff]
    %v143 = vld [vmem:[#allocation5 + $0x248] sm:$0xff]
    %v144 = vld [vmem:[#allocation5 + $0x250] sm:$0xff]
    %v145 = vld [vmem:[#allocation5 + $0x258] sm:$0xff]
    %v146 = vld [vmem:[#allocation5 + $0x260] sm:$0xff]
    %v147 = vld [vmem:[#allocation5 + $0x268] sm:$0xff]
    %v148 = vld [vmem:[#allocation5 + $0x270] sm:$0xff]
    %v149 = vld [vmem:[#allocation5 + $0x278] sm:$0xff]
    %v150 = vld [vmem:[#allocation5 + $0x280] sm:$0xff]
    %v151 = vld [vmem:[#allocation5 + $0x288] sm:$0xff]
    %v152 = vld [vmem:[#allocation5 + $0x290] sm:$0xff]
    %v153 = vld [vmem:[#allocation5 + $0x298] sm:$0xff]
    %v154 = vld [vmem:[#allocation5 + $0x2a0] sm:$0xff]
    %v155 = vld [vmem:[#allocation5 + $0x2a8] sm:$0xff]
    %v156 = vld [vmem:[#allocation5 + $0x2b0] sm:$0xff]
    %v157 = vld [vmem:[#allocation5 + $0x2b8] sm:$0xff]
    %v158 = vld [vmem:[#allocation5 + $0x2c0] sm:$0xff]
    %v159 = vld [vmem:[#allocation5 + $0x2c8] sm:$0xff]
    %v160 = vld [vmem:[#allocation5 + $0x2d0] sm:$0xff]
    %v161 = vld [vmem:[#allocation5 + $0x2d8] sm:$0xff]
    %v162 = vld [vmem:[#allocation5 + $0x2e0] sm:$0xff]
    %v163 = vld [vmem:[#allocation5 + $0x2e8] sm:$0xff]
    %v164 = vld [vmem:[#allocation5 + $0x2f0] sm:$0xff]
    %v165 = vld [vmem:[#allocation5 + $0x2f8] sm:$0xff]
    %v166 = vld [vmem:[#allocation5 + $0x300] sm:$0xff]
    %v167 = vld [vmem:[#allocation5 + $0x308] sm:$0xff]
    %v168 = vld [vmem:[#allocation5 + $0x310] sm:$0xff]
    %v169 = vld [vmem:[#allocation5 + $0x318] sm:$0xff]
    %v170 = vld [vmem:[#allocation5 + $0x320] sm:$0xff]
    %v171 = vld [vmem:[#allocation5 + $0x328] sm:$0xff]
    %v172 = vld [vmem:[#allocation5 + $0x330] sm:$0xff]
    %v173 = vld [vmem:[#allocation5 + $0x338] sm:$0xff]
    %vm174 = vcmask 523264
    %v176 = vsel %vm174, %v68, 0
    %v179 = vsel %vm174, %v69, 0
    %181 = vmatpush.msra.mxu0 0.0
    %182 = vmatpush.msra.mxu0 0.0
    %183 = vmatpush.msra.mxu0 0.0
    %184 = vmatpush.msra.mxu0 0.0
    %185 = vmatpush.msra.mxu0 0.0
    %186 = vmatpush.msra.mxu0 0.0
    %187 = vmatpush.msra.mxu0 0.0
    %188 = vmatpush.msra.mxu0 0.0
    %189 = vmatpush.msra.mxu0 %v161
    %190 = vmatpush.msra.mxu0 %v148
    %191 = vmatpush.msra.mxu0 %v135
    %192 = vmatpush.msra.mxu0 %v122
    %193 = vmatpush.msra.mxu0 %v109
    %194 = vmatpush.msra.mxu0 %v96
    %195 = vmatpush.msra.mxu0 %v83
    %196 = vmatpush.msra.mxu0 %v70
    %197 = vmatmul.f32.gmra.mxu0 %v176
    %v198 = vpop.f32.mrf.mxu0
    %v199 = vadd.f32 0.0, %v198
    %200 = vmatmul.f32.gmra.mxu0 %v179
    %v201 = vpop.f32.mrf.mxu0
    %v202 = vadd.f32 0.0, %v201
    %203 = vdwg.mxu0
    %204 = vmatpush.msra.mxu0 0.0
    %205 = vmatpush.msra.mxu0 0.0
    %206 = vmatpush.msra.mxu0 0.0
    %207 = vmatpush.msra.mxu0 0.0
    %208 = vmatpush.msra.mxu0 0.0
    %209 = vmatpush.msra.mxu0 0.0
    %210 = vmatpush.msra.mxu0 0.0
    %211 = vmatpush.msra.mxu0 0.0
    %212 = vmatpush.msra.mxu0 %v162
    %213 = vmatpush.msra.mxu0 %v149
    %214 = vmatpush.msra.mxu0 %v136
    %215 = vmatpush.msra.mxu0 %v123
    %216 = vmatpush.msra.mxu0 %v110
    %217 = vmatpush.msra.mxu0 %v97
    %218 = vmatpush.msra.mxu0 %v84
    %219 = vmatpush.msra.mxu0 %v71
    %220 = vmatmul.f32.gmra.mxu0 %v176
    %v221 = vpop.f32.mrf.mxu0
    %v222 = vadd.f32 0.0, %v221
    %223 = vmatmul.f32.gmra.mxu0 %v179
    %v224 = vpop.f32.mrf.mxu0
    %v225 = vadd.f32 0.0, %v224
    %226 = vdwg.mxu0
    %227 = vmatpush.msra.mxu0 0.0
    %228 = vmatpush.msra.mxu0 0.0
    %229 = vmatpush.msra.mxu0 0.0
    %230 = vmatpush.msra.mxu0 0.0
    %231 = vmatpush.msra.mxu0 0.0
    %232 = vmatpush.msra.mxu0 0.0
    %233 = vmatpush.msra.mxu0 0.0
    %234 = vmatpush.msra.mxu0 0.0
    %235 = vmatpush.msra.mxu0 %v163
    %236 = vmatpush.msra.mxu0 %v150
    %237 = vmatpush.msra.mxu0 %v137
    %238 = vmatpush.msra.mxu0 %v124
    %239 = vmatpush.msra.mxu0 %v111
    %240 = vmatpush.msra.mxu0 %v98
    %241 = vmatpush.msra.mxu0 %v85
    %242 = vmatpush.msra.mxu0 %v72
    %243 = vmatmul.f32.gmra.mxu0 %v176
    %v244 = vpop.f32.mrf.mxu0
    %v245 = vadd.f32 0.0, %v244
    %246 = vmatmul.f32.gmra.mxu0 %v179
    %v247 = vpop.f32.mrf.mxu0
    %v248 = vadd.f32 0.0, %v247
    %249 = vdwg.mxu0
    %250 = vmatpush.msra.mxu0 0.0
    %251 = vmatpush.msra.mxu0 0.0
    %252 = vmatpush.msra.mxu0 0.0
    %253 = vmatpush.msra.mxu0 0.0
    %254 = vmatpush.msra.mxu0 0.0
    %255 = vmatpush.msra.mxu0 0.0
    %256 = vmatpush.msra.mxu0 0.0
    %257 = vmatpush.msra.mxu0 0.0
    %258 = vmatpush.msra.mxu0 %v164
    %259 = vmatpush.msra.mxu0 %v151
    %260 = vmatpush.msra.mxu0 %v138
    %261 = vmatpush.msra.mxu0 %v125
    %262 = vmatpush.msra.mxu0 %v112
    %263 = vmatpush.msra.mxu0 %v99
    %264 = vmatpush.msra.mxu0 %v86
    %265 = vmatpush.msra.mxu0 %v73
    %266 = vmatmul.f32.gmra.mxu0 %v176
    %v267 = vpop.f32.mrf.mxu0
    %v268 = vadd.f32 0.0, %v267
    %269 = vmatmul.f32.gmra.mxu0 %v179
    %v270 = vpop.f32.mrf.mxu0
    %v271 = vadd.f32 0.0, %v270
    %272 = vdwg.mxu0
    %273 = vmatpush.msra.mxu0 0.0
    %274 = vmatpush.msra.mxu0 0.0
    %275 = vmatpush.msra.mxu0 0.0
    %276 = vmatpush.msra.mxu0 0.0
    %277 = vmatpush.msra.mxu0 0.0
    %278 = vmatpush.msra.mxu0 0.0
    %279 = vmatpush.msra.mxu0 0.0
    %280 = vmatpush.msra.mxu0 0.0
    %281 = vmatpush.msra.mxu0 %v165
    %282 = vmatpush.msra.mxu0 %v152
    %283 = vmatpush.msra.mxu0 %v139
    %284 = vmatpush.msra.mxu0 %v126
    %285 = vmatpush.msra.mxu0 %v113
    %286 = vmatpush.msra.mxu0 %v100
    %287 = vmatpush.msra.mxu0 %v87
    %288 = vmatpush.msra.mxu0 %v74
    %289 = vmatmul.f32.gmra.mxu0 %v176
    %v290 = vpop.f32.mrf.mxu0
    %v291 = vadd.f32 0.0, %v290
    %292 = vmatmul.f32.gmra.mxu0 %v179
    %v293 = vpop.f32.mrf.mxu0
    %v294 = vadd.f32 0.0, %v293
    %295 = vdwg.mxu0
    %296 = vmatpush.msra.mxu0 0.0
    %297 = vmatpush.msra.mxu0 0.0
    %298 = vmatpush.msra.mxu0 0.0
    %299 = vmatpush.msra.mxu0 0.0
    %300 = vmatpush.msra.mxu0 0.0
    %301 = vmatpush.msra.mxu0 0.0
    %302 = vmatpush.msra.mxu0 0.0
    %303 = vmatpush.msra.mxu0 0.0
    %304 = vmatpush.msra.mxu0 %v166
    %305 = vmatpush.msra.mxu0 %v153
    %306 = vmatpush.msra.mxu0 %v140
    %307 = vmatpush.msra.mxu0 %v127
    %308 = vmatpush.msra.mxu0 %v114
    %309 = vmatpush.msra.mxu0 %v101
    %310 = vmatpush.msra.mxu0 %v88
    %311 = vmatpush.msra.mxu0 %v75
    %312 = vmatmul.f32.gmra.mxu0 %v176
    %v313 = vpop.f32.mrf.mxu0
    %v314 = vadd.f32 0.0, %v313
    %315 = vmatmul.f32.gmra.mxu0 %v179
    %v316 = vpop.f32.mrf.mxu0
    %v317 = vadd.f32 0.0, %v316
    %318 = vdwg.mxu0
    %319 = vmatpush.msra.mxu0 0.0
    %320 = vmatpush.msra.mxu0 0.0
    %321 = vmatpush.msra.mxu0 0.0
    %322 = vmatpush.msra.mxu0 0.0
    %323 = vmatpush.msra.mxu0 0.0
    %324 = vmatpush.msra.mxu0 0.0
    %325 = vmatpush.msra.mxu0 0.0
    %326 = vmatpush.msra.mxu0 0.0
    %327 = vmatpush.msra.mxu0 %v167
    %328 = vmatpush.msra.mxu0 %v154
    %329 = vmatpush.msra.mxu0 %v141
    %330 = vmatpush.msra.mxu0 %v128
    %331 = vmatpush.msra.mxu0 %v115
    %332 = vmatpush.msra.mxu0 %v102
    %333 = vmatpush.msra.mxu0 %v89
    %334 = vmatpush.msra.mxu0 %v76
    %335 = vmatmul.f32.gmra.mxu0 %v176
    %v336 = vpop.f32.mrf.mxu0
    %v337 = vadd.f32 0.0, %v336
    %338 = vmatmul.f32.gmra.mxu0 %v179
    %v339 = vpop.f32.mrf.mxu0
    %v340 = vadd.f32 0.0, %v339
    %341 = vdwg.mxu0
    %342 = vmatpush.msra.mxu0 0.0
    %343 = vmatpush.msra.mxu0 0.0
    %344 = vmatpush.msra.mxu0 0.0
    %345 = vmatpush.msra.mxu0 0.0
    %346 = vmatpush.msra.mxu0 0.0
    %347 = vmatpush.msra.mxu0 0.0
    %348 = vmatpush.msra.mxu0 0.0
    %349 = vmatpush.msra.mxu0 0.0
    %350 = vmatpush.msra.mxu0 %v168
    %351 = vmatpush.msra.mxu0 %v155
    %352 = vmatpush.msra.mxu0 %v142
    %353 = vmatpush.msra.mxu0 %v129
    %354 = vmatpush.msra.mxu0 %v116
    %355 = vmatpush.msra.mxu0 %v103
    %356 = vmatpush.msra.mxu0 %v90
    %357 = vmatpush.msra.mxu0 %v77
    %358 = vmatmul.f32.gmra.mxu0 %v176
    %v359 = vpop.f32.mrf.mxu0
    %v360 = vadd.f32 0.0, %v359
    %361 = vmatmul.f32.gmra.mxu0 %v179
    %v362 = vpop.f32.mrf.mxu0
    %v363 = vadd.f32 0.0, %v362
    %364 = vdwg.mxu0
    %365 = vmatpush.msra.mxu0 0.0
    %366 = vmatpush.msra.mxu0 0.0
    %367 = vmatpush.msra.mxu0 0.0
    %368 = vmatpush.msra.mxu0 0.0
    %369 = vmatpush.msra.mxu0 0.0
    %370 = vmatpush.msra.mxu0 0.0
    %371 = vmatpush.msra.mxu0 0.0
    %372 = vmatpush.msra.mxu0 0.0
    %373 = vmatpush.msra.mxu0 %v169
    %374 = vmatpush.msra.mxu0 %v156
    %375 = vmatpush.msra.mxu0 %v143
    %376 = vmatpush.msra.mxu0 %v130
    %377 = vmatpush.msra.mxu0 %v117
    %378 = vmatpush.msra.mxu0 %v104
    %379 = vmatpush.msra.mxu0 %v91
    %380 = vmatpush.msra.mxu0 %v78
    %381 = vmatmul.f32.gmra.mxu0 %v176
    %v382 = vpop.f32.mrf.mxu0
    %v383 = vadd.f32 0.0, %v382
    %384 = vmatmul.f32.gmra.mxu0 %v179
    %v385 = vpop.f32.mrf.mxu0
    %v386 = vadd.f32 0.0, %v385
    %387 = vdwg.mxu0
    %388 = vmatpush.msra.mxu0 0.0
    %389 = vmatpush.msra.mxu0 0.0
    %390 = vmatpush.msra.mxu0 0.0
    %391 = vmatpush.msra.mxu0 0.0
    %392 = vmatpush.msra.mxu0 0.0
    %393 = vmatpush.msra.mxu0 0.0
    %394 = vmatpush.msra.mxu0 0.0
    %395 = vmatpush.msra.mxu0 0.0
    %396 = vmatpush.msra.mxu0 %v170
    %397 = vmatpush.msra.mxu0 %v157
    %398 = vmatpush.msra.mxu0 %v144
    %399 = vmatpush.msra.mxu0 %v131
    %400 = vmatpush.msra.mxu0 %v118
    %401 = vmatpush.msra.mxu0 %v105
    %402 = vmatpush.msra.mxu0 %v92
    %403 = vmatpush.msra.mxu0 %v79
    %404 = vmatmul.f32.gmra.mxu0 %v176
    %v405 = vpop.f32.mrf.mxu0
    %v406 = vadd.f32 0.0, %v405
    %407 = vmatmul.f32.gmra.mxu0 %v179
    %v408 = vpop.f32.mrf.mxu0
    %v409 = vadd.f32 0.0, %v408
    %410 = vdwg.mxu0
    %411 = vmatpush.msra.mxu0 0.0
    %412 = vmatpush.msra.mxu0 0.0
    %413 = vmatpush.msra.mxu0 0.0
    %414 = vmatpush.msra.mxu0 0.0
    %415 = vmatpush.msra.mxu0 0.0
    %416 = vmatpush.msra.mxu0 0.0
    %417 = vmatpush.msra.mxu0 0.0
    %418 = vmatpush.msra.mxu0 0.0
    %419 = vmatpush.msra.mxu0 %v171
    %420 = vmatpush.msra.mxu0 %v158
    %421 = vmatpush.msra.mxu0 %v145
    %422 = vmatpush.msra.mxu0 %v132
    %423 = vmatpush.msra.mxu0 %v119
    %424 = vmatpush.msra.mxu0 %v106
    %425 = vmatpush.msra.mxu0 %v93
    %426 = vmatpush.msra.mxu0 %v80
    %427 = vmatmul.f32.gmra.mxu0 %v176
    %v428 = vpop.f32.mrf.mxu0
    %v429 = vadd.f32 0.0, %v428
    %430 = vmatmul.f32.gmra.mxu0 %v179
    %v431 = vpop.f32.mrf.mxu0
    %v432 = vadd.f32 0.0, %v431
    %433 = vdwg.mxu0
    %434 = vmatpush.msra.mxu0 0.0
    %435 = vmatpush.msra.mxu0 0.0
    %436 = vmatpush.msra.mxu0 0.0
    %437 = vmatpush.msra.mxu0 0.0
    %438 = vmatpush.msra.mxu0 0.0
    %439 = vmatpush.msra.mxu0 0.0
    %440 = vmatpush.msra.mxu0 0.0
    %441 = vmatpush.msra.mxu0 0.0
    %442 = vmatpush.msra.mxu0 %v172
    %443 = vmatpush.msra.mxu0 %v159
    %444 = vmatpush.msra.mxu0 %v146
    %445 = vmatpush.msra.mxu0 %v133
    %446 = vmatpush.msra.mxu0 %v120
    %447 = vmatpush.msra.mxu0 %v107
    %448 = vmatpush.msra.mxu0 %v94
    %449 = vmatpush.msra.mxu0 %v81
    %450 = vmatmul.f32.gmra.mxu0 %v176
    %v451 = vpop.f32.mrf.mxu0
    %v452 = vadd.f32 0.0, %v451
    %453 = vmatmul.f32.gmra.mxu0 %v179
    %v454 = vpop.f32.mrf.mxu0
    %v455 = vadd.f32 0.0, %v454
    %456 = vdwg.mxu0
    %457 = vmatpush.msra.mxu0 0.0
    %458 = vmatpush.msra.mxu0 0.0
    %459 = vmatpush.msra.mxu0 0.0
    %460 = vmatpush.msra.mxu0 0.0
    %461 = vmatpush.msra.mxu0 0.0
    %462 = vmatpush.msra.mxu0 0.0
    %463 = vmatpush.msra.mxu0 0.0
    %464 = vmatpush.msra.mxu0 0.0
    %465 = vmatpush.msra.mxu0 %v173
    %466 = vmatpush.msra.mxu0 %v160
    %467 = vmatpush.msra.mxu0 %v147
    %468 = vmatpush.msra.mxu0 %v134
    %469 = vmatpush.msra.mxu0 %v121
    %470 = vmatpush.msra.mxu0 %v108
    %471 = vmatpush.msra.mxu0 %v95
    %472 = vmatpush.msra.mxu0 %v82
    %473 = vmatmul.f32.gmra.mxu0 %v176
    %v474 = vpop.f32.mrf.mxu0
    %v475 = vadd.f32 0.0, %v474
    %476 = vmatmul.f32.gmra.mxu0 %v179
    %v477 = vpop.f32.mrf.mxu0
    %v478 = vadd.f32 0.0, %v477
    %479 = vdwg.mxu0
    %v480 = vmax.f32 %v199, %v222
    %v481 = vmax.f32 %v202, %v225
    %v482 = vmax.f32 %v480, %v245
    %v483 = vmax.f32 %v481, %v248
    %v484 = vmax.f32 %v482, %v268
    %v485 = vmax.f32 %v483, %v271
    %v486 = vmax.f32 %v484, %v291
    %v487 = vmax.f32 %v485, %v294
    %v488 = vmax.f32 %v486, %v314
    %v489 = vmax.f32 %v487, %v317
    %v490 = vmax.f32 %v488, %v337
    %v491 = vmax.f32 %v489, %v340
    %v492 = vmax.f32 %v490, %v360
    %v493 = vmax.f32 %v491, %v363
    %v494 = vmax.f32 %v492, %v383
    %v495 = vmax.f32 %v493, %v386
    %v496 = vmax.f32 %v494, %v406
    %v497 = vmax.f32 %v495, %v409
    %v498 = vmax.f32 %v496, %v429
    %v499 = vmax.f32 %v497, %v432
    %v500 = vmax.f32 %v498, %v452
    %v501 = vmax.f32 %v499, %v455
    %v502 = vmax.f32 %v500, %v475
    %v503 = vmax.f32 %v501, %v478
    %v504 = vld [vmem:[%s2] sm:$0x1]
    %v506 = vperm.slane %v504, 0
    %v508 = vadd.f32 %v502, %v506
    %v509 = vadd.f32 %v503, %v506
    %v510 = vtanh.pop %v508
    %v511 = vtanh.pop %v509
    %v512 = vld [vmem:[#allocation7] sm:$0xff]
    %v513 = vld [vmem:[#allocation7 + $0x8] sm:$0xff]
    %v514 = vld [vmem:[#allocation7 + $0x10] sm:$0xff]
    %v515 = vld [vmem:[#allocation7 + $0x18] sm:$0xff]
    %v516 = vld [vmem:[#allocation7 + $0x20] sm:$0xff]
    %v517 = vld [vmem:[#allocation7 + $0x28] sm:$0xff]
    %v518 = vld [vmem:[#allocation7 + $0x30] sm:$0xff]
    %v519 = vld [vmem:[#allocation7 + $0x38] sm:$0xff]
    %v520 = vld [vmem:[#allocation7 + $0x40] sm:$0xff]
    %v521 = vld [vmem:[#allocation7 + $0x48] sm:$0xff]
    %v522 = vld [vmem:[#allocation7 + $0x50] sm:$0xff]
    %v523 = vld [vmem:[#allocation7 + $0x58] sm:$0xff]
    %v524 = vld [vmem:[#allocation7 + $0x60] sm:$0xff]
    %v525 = vld [vmem:[#allocation7 + $0x68] sm:$0xff]
    %v526 = vld [vmem:[#allocation7 + $0x70] sm:$0xff]
    %v527 = vld [vmem:[#allocation7 + $0x78] sm:$0xff]
    %v528 = vld [vmem:[%s4] sm:$0x1]
    %v530 = vperm.slane %v528, 0
    %532 = vmatpush.msra.mxu0 %v527
    %533 = vmatpush.msra.mxu0 %v526
    %534 = vmatpush.msra.mxu0 %v525
    %535 = vmatpush.msra.mxu0 %v524
    %536 = vmatpush.msra.mxu0 %v523
    %537 = vmatpush.msra.mxu0 %v522
    %538 = vmatpush.msra.mxu0 %v521
    %539 = vmatpush.msra.mxu0 %v520
    %540 = vmatpush.msra.mxu0 %v519
    %541 = vmatpush.msra.mxu0 %v518
    %542 = vmatpush.msra.mxu0 %v517
    %543 = vmatpush.msra.mxu0 %v516
    %544 = vmatpush.msra.mxu0 %v515
    %545 = vmatpush.msra.mxu0 %v514
    %546 = vmatpush.msra.mxu0 %v513
    %547 = vmatpush.msra.mxu0 %v512
    %548 = vmatmul.f32.gmra.mxu0 %v510
    %v549 = vpop.f32.mrf.mxu0
    %v550 = vadd.f32 %v530, %v549
    %551 = vmatmul.f32.gmra.mxu0 %v511
    %v552 = vpop.f32.mrf.mxu0
    %v553 = vadd.f32 %v530, %v552
    %554 = vdwg.mxu0
    %555 = vst [vmem:[#allocation8] sm:$0xff] %v550
    %556 = vst [vmem:[#allocation8 + $0x8] sm:$0xff] %v553
    // Predicated region
    $region34: #{tpu_custom_call.1} parent=1 // pred_check
      _
    $region35: #{tpu_custom_call.1} parent=1 // pred_check_branch
      %558 = sbr.rel (0) target = $region37
    $region36: #{tpu_custom_call.1} parent=1 // pred_region
      %560 = vsyncadd [#allocation4], 0
      %s561 = sshll.u32 [#allocation8], 4
      %s562 = int_to_ptr.vmem [resolvable:$true] %s561
      %s563 = sshll.u32 %s5, 4
      %s564 = int_to_ptr.hbm [resolvable:$true] %s563
      %569 = dma.vmem_to_hbm [thread:$0]  %s562, 256, %s564, [#allocation4], 128, 128, 8
    $region37: #{tpu_custom_call.1} parent=1 // pred_fallthru
      _
    // Predicated region
    $region38: #{tpu_custom_call.1} parent=1 // pred_check
      _
    $region39: #{tpu_custom_call.1} parent=1 // pred_check_branch
      %571 = sbr.rel (0) target = $region41
    $region40: #{tpu_custom_call.1} parent=1 // pred_region
      %573 = dma.done [#allocation4], 256
    $region41: #{tpu_custom_call.1} parent=1 // pred_fallthru
      _
    %574 = vsyncpa [#allocation3], 1
    %575 = vsyncpa [#allocation6], 1
    %576 = vsyncpa [#allocation4], 1

</llo_original>
